<compile_context>
chip_gen: v5e
topology: v5e:2x2
jax: 0.10.0
libtpu: 0.0.40
codegen_flags: <defaults>
</compile_context>

<pallas_src>
import jax
import jax.numpy as jnp
from jax.experimental import pallas as pl
from jax.experimental.pallas import tpu as pltpu


# ----------------------------------------------------------------------------
# Kernels
# ----------------------------------------------------------------------------
def _single_block_kernel(x_ref, w_ref, b_ref, o_ref):
    # Whole problem resident in VMEM: one MXU matmul + fused bias add.
    o_ref[...] = (
        jnp.dot(x_ref[...], w_ref[...], preferred_element_type=jnp.float32)
        + b_ref[...].astype(jnp.float32)
    ).astype(o_ref.dtype)


def _mn_tiled_kernel(x_ref, w_ref, b_ref, o_ref):
    # grid = (M//tm, N//tn); full K per tile -> no reduction axis, no scratch.
    o_ref[...] = (
        jnp.dot(x_ref[...], w_ref[...], preferred_element_type=jnp.float32)
        + b_ref[...].astype(jnp.float32)
    ).astype(o_ref.dtype)


def _k_tiled_kernel(x_ref, w_ref, b_ref, o_ref, acc_ref):
    # grid = (M//tm, N//tn, K//tk); reduction axis K is last ("arbitrary").
    k = pl.program_id(2)

    @pl.when(k == 0)
    def _():
        # Initialize the accumulator with the broadcast bias so no epilogue
        # add is needed.
        acc_ref[...] = jnp.broadcast_to(
            b_ref[...].astype(jnp.float32), acc_ref.shape
        )

    acc_ref[...] += jnp.dot(
        x_ref[...], w_ref[...], preferred_element_type=jnp.float32
    )

    @pl.when(k == pl.num_programs(2) - 1)
    def _():
        o_ref[...] = acc_ref[...].astype(o_ref.dtype)


# ----------------------------------------------------------------------------
# Wrapper
# ----------------------------------------------------------------------------
def _round_up(a, b):
    return ((a + b - 1) // b) * b


def init_linear_params(weight, bias):
    """One-time parameter prep (hoisted out of the per-forward path).

    weight: [N, K] (PyTorch nn.Linear layout), bias: [N]
    returns (w_t [K, N], b2 [1, N]).
    """
    w_t = jnp.asarray(weight).T
    b2 = jnp.asarray(bias).reshape(1, -1)
    return w_t, b2


def linear_forward(
    x,
    w_t,
    b2,
    *,
    single_block_vmem_limit=24 * 1024 * 1024,
    mn_vmem_limit=20 * 1024 * 1024,
):
    """x: [M, K]; w_t: [K, N] (pre-transposed); b2: [1, N]."""
    M, K = x.shape
    K2, N = w_t.shape
    assert K == K2 and b2.shape == (1, N)

    itemsize = 4  # f32 accounting (conservative)
    total_bytes = itemsize * (M * K + K * N + N + M * N)

    # ---- path 1: everything fits VMEM -> single block ----------------------
    if total_bytes <= single_block_vmem_limit:
        Mp = _round_up(M, 8)
        Kp = _round_up(K, 128)
        Np = _round_up(N, 128)
        xp = x if (Mp, Kp) == (M, K) else jnp.pad(x, ((0, Mp - M), (0, Kp - K)))
        wp = w_t if (Kp, Np) == (K, N) else jnp.pad(w_t, ((0, Kp - K), (0, Np - N)))
        bp = b2 if Np == N else jnp.pad(b2, ((0, 0), (0, Np - N)))

        out = pl.pallas_call(
            _single_block_kernel,
            out_shape=jax.ShapeDtypeStruct((Mp, Np), x.dtype),
        )(xp, wp, bp)
        return out[:M, :N] if (Mp, Np) != (M, N) else out

    # Common tile sizes (lane-dense output blocks).
    tm = min(256, _round_up(M, 8))
    tn = min(512, _round_up(N, 128))
    Kp = _round_up(K, 128)

    # Per-grid-step VMEM estimate for the K-resident path (double-buffered).
    mn_step_bytes = 2 * itemsize * (tm * Kp + Kp * tn + tn + tm * tn)

    # ---- path 2: tile M and N only, keep full K per tile -------------------
    if mn_step_bytes <= mn_vmem_limit:
        Mp = _round_up(M, tm)
        Np = _round_up(N, tn)
        xp = x if (Mp, Kp) == (M, K) else jnp.pad(x, ((0, Mp - M), (0, Kp - K)))
        wp = w_t if (Kp, Np) == (K, N) else jnp.pad(w_t, ((0, Kp - K), (0, Np - N)))
        bp = b2 if Np == N else jnp.pad(b2, ((0, 0), (0, Np - N)))

        out = pl.pallas_call(
            _mn_tiled_kernel,
            out_shape=jax.ShapeDtypeStruct((Mp, Np), x.dtype),
            grid_spec=pltpu.PrefetchScalarGridSpec(
                num_scalar_prefetch=0,
                grid=(Mp // tm, Np // tn),
                in_specs=[
                    pl.BlockSpec((tm, Kp), lambda i, j: (i, 0)),   # x row-panel
                    pl.BlockSpec((Kp, tn), lambda i, j: (0, j)),   # W^T col-panel
                    pl.BlockSpec((1, tn), lambda i, j: (0, j)),    # bias tile
                ],
                out_specs=pl.BlockSpec((tm, tn), lambda i, j: (i, j)),
            ),
            compiler_params=pltpu.CompilerParams(
                dimension_semantics=("parallel", "parallel"),
            ),
        )(xp, wp, bp)
        return out[:M, :N] if (Mp, Np) != (M, N) else out

    # ---- path 3: huge K -> tiled K-reduction matmul -------------------------
    tk = min(512, Kp)
    Mp, Np, Kp = _round_up(M, tm), _round_up(N, tn), _round_up(K, tk)

    xp = x if (Mp, Kp) == (M, K) else jnp.pad(x, ((0, Mp - M), (0, Kp - K)))
    wp = w_t if (Kp, Np) == (K, N) else jnp.pad(w_t, ((0, Kp - K), (0, Np - N)))
    bp = b2 if Np == N else jnp.pad(b2, ((0, 0), (0, Np - N)))

    out = pl.pallas_call(
        _k_tiled_kernel,
        out_shape=jax.ShapeDtypeStruct((Mp, Np), x.dtype),
        grid_spec=pltpu.PrefetchScalarGridSpec(
            num_scalar_prefetch=0,
            grid=(Mp // tm, Np // tn, Kp // tk),
            in_specs=[
                pl.BlockSpec((tm, tk), lambda i, j, k: (i, k)),   # x tile
                pl.BlockSpec((tk, tn), lambda i, j, k: (k, j)),   # W^T tile
                pl.BlockSpec((1, tn), lambda i, j, k: (0, j)),    # bias tile
            ],
            out_specs=pl.BlockSpec((tm, tn), lambda i, j, k: (i, j)),
            scratch_shapes=[pltpu.VMEM((tm, tn), jnp.float32)],
        ),
        compiler_params=pltpu.CompilerParams(
            dimension_semantics=("parallel", "parallel", "arbitrary"),
        ),
    )(xp, wp, bp)
    return out[:M, :N] if (Mp, Np) != (M, N) else out


# TODO(synk): forward() returns raw logits exactly like the PyTorch module
# (no sigmoid/softmax in LogisticRegressionModel.forward).


if __name__ == "__main__":
    # Small synthetic shapes consistent with the module:
    # a batch of SSL feature vectors -> class logits.
    batch = 8
    input_dim = 256    # stand-in for the SSL feature dim
    output_dim = 128   # stand-in for number of classes

    key = jax.random.PRNGKey(0)
    kx, kw, kb = jax.random.split(key, 3)

    x = jax.random.normal(kx, (batch, input_dim), dtype=jnp.float32)
    # Deterministic nn.Linear-style init (uniform in +-1/sqrt(fan_in)).
    bound = 1.0 / (input_dim ** 0.5)
    weight = jax.random.uniform(
        kw, (output_dim, input_dim), minval=-bound, maxval=bound,
        dtype=jnp.float32)
    bias = jax.random.uniform(
        kb, (output_dim,), minval=-bound, maxval=bound, dtype=jnp.float32)

    # One-time parameter prep (hoisted out of the forward path).
    w_t, b2 = init_linear_params(weight, bias)

    forward = jax.jit(linear_forward)
    out = forward(x, w_t, b2)
    out = jax.block_until_ready(out)

    ref = x @ weight.T + bias
    assert out.shape == (batch, output_dim)
    assert jnp.allclose(out, ref, atol=1e-5, rtol=1e-5)

    # Exercise the MN-tiled (K-resident) path.
    out_mn = jax.block_until_ready(
        linear_forward(x, w_t, b2, single_block_vmem_limit=0)
    )
    assert jnp.allclose(out_mn, ref, atol=1e-5, rtol=1e-5)

    # Exercise the K-tiled reduction fallback.
    out_k = jax.block_until_ready(
        linear_forward(x, w_t, b2, single_block_vmem_limit=0, mn_vmem_limit=0)
    )
    assert jnp.allclose(out_k, ref, atol=1e-5, rtol=1e-5)

    print("KERNEL_OK")
</pallas_src>

<mosaic_0001>
module attributes {stable_mosaic.version = 11 : i64} {
  func.func @_single_block_kernel(%arg0: memref<8x256xf32, #tpu.memory_space<vmem>>, %arg1: memref<256x128xf32, #tpu.memory_space<vmem>>, %arg2: memref<1x128xf32, #tpu.memory_space<vmem>>, %arg3: memref<8x128xf32, #tpu.memory_space<vmem>>) attributes {dimension_semantics = [], scalar_prefetch = 0 : i64, scratch_operands = 0 : i64, tpu.core_type = #tpu.core_type<tc>} {
    %c0 = arith.constant 0 : index
    %c0_0 = arith.constant 0 : index
    %0 = vector.load %arg0[%c0, %c0_0] : memref<8x256xf32, #tpu.memory_space<vmem>>, vector<8x256xf32>
    %c0_1 = arith.constant 0 : index
    %c0_2 = arith.constant 0 : index
    %1 = vector.load %arg1[%c0_1, %c0_2] : memref<256x128xf32, #tpu.memory_space<vmem>>, vector<256x128xf32>
    %cst = arith.constant dense<0.000000e+00> : vector<8x128xf32>
    %2 = tpu.matmul %0, %1, %cst {dimension_numbers = #tpu.dot_dimension_numbers<[1], [0], [0], [1], [0, 0, 1, 1], [], []>} : vector<8x256xf32>, vector<256x128xf32>, vector<8x128xf32> -> vector<8x128xf32>
    %c0_3 = arith.constant 0 : index
    %c0_4 = arith.constant 0 : index
    %3 = vector.load %arg2[%c0_3, %c0_4] : memref<1x128xf32, #tpu.memory_space<vmem>>, vector<1x128xf32>
    %4 = vector.broadcast %3 : vector<1x128xf32> to vector<8x128xf32>
    %5 = arith.addf %2, %4 : vector<8x128xf32>
    %c0_5 = arith.constant 0 : index
    %c0_6 = arith.constant 0 : index
    %6 = vector.load %arg3[%c0_5, %c0_6] : memref<8x128xf32, #tpu.memory_space<vmem>>, vector<8x128xf32>
    tpu.vector_store %arg3[%c0_5, %c0_6], %5 {strides = array<i32>} : memref<8x128xf32, #tpu.memory_space<vmem>>, vector<8x128xf32>,
    return
  }
}

</mosaic_0001>

<llo_original>
// kernel: linear_forward.1
$region0: #{linear_forward.1}
  #allocation0 [shape = 'u32[]', space=smem, size = 0x4, offset = 0x4, fixed_abs, tag = 'smem constant byte address 0x4 - core index']
  #allocation1 [shape = 'u32[72,128]{1,0:T(1,128)}', space=vmem, size = 0x9000, scoped, tag = 'internal scratch']
  %s0 = inlined_call_operand.hbm [shape: f32[8,256], index: 0, kind: input, shape index: {}]
  %s1 = inlined_call_operand.hbm [shape: f32[256,128], index: 1, kind: input, shape index: {}]
  %s2 = inlined_call_operand.vmem [shape: f32[1,128], index: 2, kind: input, shape index: {}]
  %s3 = inlined_call_operand.hbm [shape: f32[8,128], index: 3, kind: output, shape index: {}]
  %s4 = sld [smem:[#allocation0]]
  $region30: #{linear_forward.1} parent=0
    _
  %s6 = ssub.s32 1, %s4
  %s7 = scalar_select 0, %s6, %s4
  $region1: #{linear_forward.1} parent=0
    #allocation2 [shape = 'u8[8192]{0}', space=vmem, size = 0x2000, scoped, tag = 'input window, operand 0, single buffered']
    #allocation3 [shape = 's32[1]{0}', space=sflag, size = 0x4, scoped, tag = 'scoped memory for linear_forward.1']
    #allocation4 [shape = 's32[1]{0}', space=sflag, size = 0x4, scoped, tag = 'scoped memory for linear_forward.1']
    #allocation5 [shape = 'u8[131072]{0}', space=vmem, size = 0x20000, scoped, tag = 'input window, operand 1, single buffered']
    #allocation6 [shape = 's32[1]{0}', space=sflag, size = 0x4, scoped, tag = 'scoped memory for linear_forward.1']
    #allocation7 [shape = 'u8[4096]{0}', space=vmem, size = 0x1000, scoped, tag = 'output window, operand 0, single buffered']
    %8 = vsyncpa [#allocation3], 0
    %9 = vsyncpa [#allocation6], 0
    %10 = vsyncpa [#allocation4], 0
    // Predicated region
    $region2: #{linear_forward.1} parent=1 // pred_check
      _
    $region3: #{linear_forward.1} parent=1 // pred_check_branch
      %12 = sbr.rel (0) target = $region5
    $region4: #{linear_forward.1} parent=1 // pred_region
      %14 = vsyncadd [#allocation3], 0
      %s16 = sshll.u32 %s0, 4
      %s17 = int_to_ptr.hbm [resolvable:$true] %s16
      %s18 = sshll.u32 [#allocation2], 4
      %s19 = int_to_ptr.vmem [resolvable:$true] %s18
      %21 = dma.hbm_to_vmem [thread:$0]  %s17, 256, %s19, [#allocation3]
    $region5: #{linear_forward.1} parent=1 // pred_fallthru
      _
    // Predicated region
    $region6: #{linear_forward.1} parent=1 // pred_check
      _
    $region7: #{linear_forward.1} parent=1 // pred_check_branch
      %23 = sbr.rel (0) target = $region9
    $region8: #{linear_forward.1} parent=1 // pred_region
      %25 = vsyncadd [#allocation6], 0
      %s26 = sshll.u32 %s1, 4
      %s27 = int_to_ptr.hbm [resolvable:$true] %s26
      %s28 = sshll.u32 [#allocation5], 4
      %s29 = int_to_ptr.vmem [resolvable:$true] %s28
      %34 = dma.hbm_to_vmem [thread:$0]  %s27, 4096, %s29, [#allocation6], 128, 128, 8
    $region9: #{linear_forward.1} parent=1 // pred_fallthru
      _
    // Predicated region
    $region10: #{linear_forward.1} parent=1 // pred_check
      _
    $region11: #{linear_forward.1} parent=1 // pred_check_branch
      %36 = sbr.rel (0) target = $region13
    $region12: #{linear_forward.1} parent=1 // pred_region
      _
    $region13: #{linear_forward.1} parent=1 // pred_fallthru
      _
    // Predicated region
    $region14: #{linear_forward.1} parent=1 // pred_check
      _
    $region15: #{linear_forward.1} parent=1 // pred_check_branch
      %38 = sbr.rel (0) target = $region17
    $region16: #{linear_forward.1} parent=1 // pred_region
      %40 = dma.done [#allocation3], 256
    $region17: #{linear_forward.1} parent=1 // pred_fallthru
      _
    // Predicated region
    $region18: #{linear_forward.1} parent=1 // pred_check
      _
    $region19: #{linear_forward.1} parent=1 // pred_check_branch
      %42 = sbr.rel (0) target = $region21
    $region20: #{linear_forward.1} parent=1 // pred_region
      %44 = dma.done [#allocation6], 4096
    $region21: #{linear_forward.1} parent=1 // pred_fallthru
      _
    %v45 = vld [vmem:[#allocation2] sm:$0xff]
    %v46 = vld [vmem:[#allocation2 + $0x8] sm:$0xff]
    %v47 = vld [vmem:[#allocation5] sm:$0xff]
    %v48 = vld [vmem:[#allocation5 + $0x8] sm:$0xff]
    %v49 = vld [vmem:[#allocation5 + $0x10] sm:$0xff]
    %v50 = vld [vmem:[#allocation5 + $0x18] sm:$0xff]
    %v51 = vld [vmem:[#allocation5 + $0x20] sm:$0xff]
    %v52 = vld [vmem:[#allocation5 + $0x28] sm:$0xff]
    %v53 = vld [vmem:[#allocation5 + $0x30] sm:$0xff]
    %v54 = vld [vmem:[#allocation5 + $0x38] sm:$0xff]
    %v55 = vld [vmem:[#allocation5 + $0x40] sm:$0xff]
    %v56 = vld [vmem:[#allocation5 + $0x48] sm:$0xff]
    %v57 = vld [vmem:[#allocation5 + $0x50] sm:$0xff]
    %v58 = vld [vmem:[#allocation5 + $0x58] sm:$0xff]
    %v59 = vld [vmem:[#allocation5 + $0x60] sm:$0xff]
    %v60 = vld [vmem:[#allocation5 + $0x68] sm:$0xff]
    %v61 = vld [vmem:[#allocation5 + $0x70] sm:$0xff]
    %v62 = vld [vmem:[#allocation5 + $0x78] sm:$0xff]
    %v63 = vld [vmem:[#allocation5 + $0x80] sm:$0xff]
    %v64 = vld [vmem:[#allocation5 + $0x88] sm:$0xff]
    %v65 = vld [vmem:[#allocation5 + $0x90] sm:$0xff]
    %v66 = vld [vmem:[#allocation5 + $0x98] sm:$0xff]
    %v67 = vld [vmem:[#allocation5 + $0xa0] sm:$0xff]
    %v68 = vld [vmem:[#allocation5 + $0xa8] sm:$0xff]
    %v69 = vld [vmem:[#allocation5 + $0xb0] sm:$0xff]
    %v70 = vld [vmem:[#allocation5 + $0xb8] sm:$0xff]
    %v71 = vld [vmem:[#allocation5 + $0xc0] sm:$0xff]
    %v72 = vld [vmem:[#allocation5 + $0xc8] sm:$0xff]
    %v73 = vld [vmem:[#allocation5 + $0xd0] sm:$0xff]
    %v74 = vld [vmem:[#allocation5 + $0xd8] sm:$0xff]
    %v75 = vld [vmem:[#allocation5 + $0xe0] sm:$0xff]
    %v76 = vld [vmem:[#allocation5 + $0xe8] sm:$0xff]
    %v77 = vld [vmem:[#allocation5 + $0xf0] sm:$0xff]
    %v78 = vld [vmem:[#allocation5 + $0xf8] sm:$0xff]
    %v79 = vld [vmem:[%s2] sm:$0x1]
    %v81 = vperm.slane %v79, 0
    %83 = vmatpush.msra.mxu0 %v62
    %84 = vmatpush.msra.mxu0 %v61
    %85 = vmatpush.msra.mxu0 %v60
    %86 = vmatpush.msra.mxu0 %v59
    %87 = vmatpush.msra.mxu0 %v58
    %88 = vmatpush.msra.mxu0 %v57
    %89 = vmatpush.msra.mxu0 %v56
    %90 = vmatpush.msra.mxu0 %v55
    %91 = vmatpush.msra.mxu0 %v54
    %92 = vmatpush.msra.mxu0 %v53
    %93 = vmatpush.msra.mxu0 %v52
    %94 = vmatpush.msra.mxu0 %v51
    %95 = vmatpush.msra.mxu0 %v50
    %96 = vmatpush.msra.mxu0 %v49
    %97 = vmatpush.msra.mxu0 %v48
    %98 = vmatpush.msra.mxu0 %v47
    %99 = vmatmul.f32.gmra.mxu0 %v45
    %v100 = vpop.f32.mrf.mxu0
    %v101 = vadd.f32 %v81, %v100
    %102 = vdwg.mxu0
    %103 = vmatpush.msra.mxu0 %v78
    %104 = vmatpush.msra.mxu0 %v77
    %105 = vmatpush.msra.mxu0 %v76
    %106 = vmatpush.msra.mxu0 %v75
    %107 = vmatpush.msra.mxu0 %v74
    %108 = vmatpush.msra.mxu0 %v73
    %109 = vmatpush.msra.mxu0 %v72
    %110 = vmatpush.msra.mxu0 %v71
    %111 = vmatpush.msra.mxu0 %v70
    %112 = vmatpush.msra.mxu0 %v69
    %113 = vmatpush.msra.mxu0 %v68
    %114 = vmatpush.msra.mxu0 %v67
    %115 = vmatpush.msra.mxu0 %v66
    %116 = vmatpush.msra.mxu0 %v65
    %117 = vmatpush.msra.mxu0 %v64
    %118 = vmatpush.msra.mxu0 %v63
    %119 = vmatmul.f32.gmra.mxu0 %v46
    %v120 = vpop.f32.mrf.mxu0
    %v121 = vadd.f32 %v101, %v120
    %122 = vdwg.mxu0
    %123 = vst [vmem:[#allocation7] sm:$0xff] %v121
    // Predicated region
    $region22: #{linear_forward.1} parent=1 // pred_check
      _
    $region23: #{linear_forward.1} parent=1 // pred_check_branch
      %125 = sbr.rel (0) target = $region25
    $region24: #{linear_forward.1} parent=1 // pred_region
      %127 = vsyncadd [#allocation4], 0
      %s129 = sshll.u32 [#allocation7], 4
      %s130 = int_to_ptr.vmem [resolvable:$true] %s129
      %s131 = sshll.u32 %s3, 4
      %s132 = int_to_ptr.hbm [resolvable:$true] %s131
      %134 = dma.vmem_to_hbm [thread:$0]  %s130, 128, %s132, [#allocation4]
    $region25: #{linear_forward.1} parent=1 // pred_fallthru
      _
    // Predicated region
    $region26: #{linear_forward.1} parent=1 // pred_check
      _
    $region27: #{linear_forward.1} parent=1 // pred_check_branch
      %136 = sbr.rel (0) target = $region29
    $region28: #{linear_forward.1} parent=1 // pred_region
      %138 = dma.done [#allocation4], 128
    $region29: #{linear_forward.1} parent=1 // pred_fallthru
      _
    %139 = vsyncpa [#allocation3], 1
    %140 = vsyncpa [#allocation6], 1
    %141 = vsyncpa [#allocation4], 1

</llo_original>
